<compile_context>
chip_gen: v7x
topology: tpu7x:2x2x1
jax: 0.10.0
libtpu: 0.0.40
codegen_flags: <defaults>
</compile_context>

<pallas_src>
import functools

import jax
import jax.numpy as jnp
from jax.experimental import pallas as pl
from jax.experimental.pallas import tpu as pltpu

_LANE = 128
_SUB = 16  # sublane-tile aligned batch blocks (covers bf16 packing)


def _round_up(n, m):
    return ((n + m - 1) // m) * m


def _num_tensorcores_per_chip():
    """Best-effort detection of per-chip TensorCore count (v7x has 2)."""
    try:
        kind = jax.devices()[0].device_kind.lower()
        if "v7" in kind:
            return 2
    except Exception:  # pragma: no cover - defensive
        pass
    return 1


# ---------------------------------------------------------------------------
# One-time parameter preparation (hoisted out of the forward path).
# ---------------------------------------------------------------------------
def prepare_params(w1, b1, w2, b2, w3, b3):
    """Cast weights to bf16 and zero-pad each layer to lane-dense widths.

    w1: [S,  H1]  -> [S,   H1p] bf16   (H1p = round_up(H1, 128))
    w2: [H1, H2]  -> [H1p, H2p] bf16
    w3: [H2, A ]  -> [H2p, A  ] bf16   (output kept A-wide; no feature slice)
    biases stay f32, padded to match.  Zero pads are exact for Linear(+ReLU).
    """
    S, H1 = w1.shape
    _, H2 = w2.shape
    _, A = w3.shape
    H1p = _round_up(H1, _LANE)
    H2p = _round_up(H2, _LANE)

    def pad_w(w, kp, np_):
        return jnp.pad(w.astype(jnp.bfloat16),
                       ((0, kp - w.shape[0]), (0, np_ - w.shape[1])))

    def pad_b(b, np_):
        b2d = jnp.asarray(b, jnp.float32).reshape(1, -1)
        return jnp.pad(b2d, ((0, 0), (0, np_ - b2d.shape[1])))

    return (pad_w(w1, S, H1p), pad_b(b1, H1p),
            pad_w(w2, H1p, H2p), pad_b(b2, H2p),
            pad_w(w3, H2p, A), pad_b(b3, A))


# ---------------------------------------------------------------------------
# Kernel: fused fc1+ReLU -> fc2+ReLU -> fc3, hidden activations kept in vregs.
# ---------------------------------------------------------------------------
def _mlp_kernel(x_ref, w1_ref, b1_ref, w2_ref, b2_ref, w3_ref, b3_ref, o_ref):
    x = x_ref[...].astype(jnp.bfloat16)                      # in-kernel cast (VPU, free)

    h1 = jnp.dot(x, w1_ref[...], preferred_element_type=jnp.float32)
    h1 = jnp.maximum(h1 + b1_ref[...], 0.0).astype(jnp.bfloat16)

    h2 = jnp.dot(h1, w2_ref[...], preferred_element_type=jnp.float32)
    h2 = jnp.maximum(h2 + b2_ref[...], 0.0).astype(jnp.bfloat16)

    out = jnp.dot(h2, w3_ref[...], preferred_element_type=jnp.float32)
    o_ref[...] = (out + b3_ref[...]).astype(o_ref.dtype)


# ---------------------------------------------------------------------------
# Forward wrapper.
# ---------------------------------------------------------------------------
@functools.partial(jax.jit, static_argnames=("block_b",))
def _forward_impl(x, w1p, b1p, w2p, b2p, w3p, b3p, *, block_b):
    B, S = x.shape
    H1p = w1p.shape[1]
    H2p = w2p.shape[1]
    A = w3p.shape[1]

    bb = block_b
    Bp = _round_up(B, bb)
    grid = (Bp // bb,)

    xp = x if Bp == B else jnp.pad(x, ((0, Bp - B), (0, 0)))

    flops = 2 * B * (S * H1p + H1p * H2p + H2p * A)
    bytes_accessed = (xp.size * 4 + w1p.size * 2 + w2p.size * 2 + w3p.size * 2
                      + (b1p.size + b2p.size + b3p.size) * 4 + Bp * A * 4)

    out = pl.pallas_call(
        _mlp_kernel,
        out_shape=jax.ShapeDtypeStruct((Bp, A), jnp.float32),
        grid_spec=pl.GridSpec(
            grid=grid,
            in_specs=[
                pl.BlockSpec((bb, S), lambda i: (i, 0)),        # x tile (raw f32)
                pl.BlockSpec((S, H1p), lambda i: (0, 0)),       # resident weights/biases
                pl.BlockSpec((1, H1p), lambda i: (0, 0)),
                pl.BlockSpec((H1p, H2p), lambda i: (0, 0)),
                pl.BlockSpec((1, H2p), lambda i: (0, 0)),
                pl.BlockSpec((H2p, A), lambda i: (0, 0)),
                pl.BlockSpec((1, A), lambda i: (0, 0)),
            ],
            out_specs=pl.BlockSpec((bb, A), lambda i: (i, 0)),  # narrow, A-wide output
        ),
        compiler_params=pltpu.CompilerParams(
            dimension_semantics=("parallel",)),
        cost_estimate=pl.CostEstimate(flops=flops, transcendentals=0,
                                      bytes_accessed=bytes_accessed),
    )(xp, w1p, b1p, w2p, b2p, w3p, b3p)

    return out if Bp == B else out[:B]


def navigation_net_forward(x, prepped_params, *, block_b=None):
    """x: [B, S] f32; prepped_params: output of prepare_params. Returns [B, A] f32."""
    B = x.shape[0]
    if block_b is None:
        b_aligned = _round_up(max(B, 1), _SUB)
        if _num_tensorcores_per_chip() >= 2 and B >= 2 * _SUB:
            # >=2 grid steps so both v7x TensorCores get work.
            block_b = _round_up(pl.cdiv(b_aligned, 2), _SUB)
        else:
            # Single TC (v5e/v6e): one big grid step, no per-step overhead.
            block_b = min(b_aligned, 1024)
    return _forward_impl(x, *prepped_params, block_b=block_b)


# ---------------------------------------------------------------------------
# Reference + init helpers.
# ---------------------------------------------------------------------------
def init_params(key, state_size, action_size):
    """PyTorch-Linear-style init (U[-1/sqrt(fan_in), 1/sqrt(fan_in)]), weights [in, out]."""
    dims = [
        (state_size, state_size * 2),
        (state_size * 2, state_size // 2),
        (state_size // 2, action_size),
    ]
    params = []
    for fan_in, fan_out in dims:
        key, kw, kb = jax.random.split(key, 3)
        bound = 1.0 / jnp.sqrt(fan_in)
        w = jax.random.uniform(kw, (fan_in, fan_out), jnp.float32, -bound, bound)
        b = jax.random.uniform(kb, (1, fan_out), jnp.float32, -bound, bound)
        params += [w, b]
    return params


def reference_forward(x, w1, b1, w2, b2, w3, b3):
    hp = jax.lax.Precision.HIGHEST
    h1 = jnp.maximum(jnp.dot(x, w1, precision=hp) + b1, 0.0)
    h2 = jnp.maximum(jnp.dot(h1, w2, precision=hp) + b2, 0.0)
    return jnp.dot(h2, w3, precision=hp) + b3


if __name__ == "__main__":
    # Small shapes consistent with the module: state_size=32, action_size=8, batch=64.
    state_size, action_size, batch = 32, 8, 64

    key = jax.random.PRNGKey(0)
    key, kx = jax.random.split(key)
    x = jax.random.normal(kx, (batch, state_size), jnp.float32)
    w1, b1, w2, b2, w3, b3 = init_params(key, state_size, action_size)

    # One-time parameter prep (hoisted out of the per-call forward path).
    prepped = prepare_params(w1, b1, w2, b2, w3, b3)
    prepped = jax.tree_util.tree_map(jax.block_until_ready, prepped)

    out = navigation_net_forward(x, prepped)
    out = jax.block_until_ready(out)

    ref = reference_forward(x, w1, b1, w2, b2, w3, b3)
    assert out.shape == (batch, action_size)
    # bf16 matmul inputs with f32 accumulation -> loose-ish tolerance vs f32 reference.
    assert jnp.allclose(out, ref, atol=5e-2, rtol=5e-2), "mismatch vs reference"

    print("KERNEL_OK")
</pallas_src>

<mosaic_0001>
module attributes {stable_mosaic.version = 11 : i64} {
  func.func @_mlp_kernel(%arg0: i32, %arg1: memref<64x32xf32, #tpu.memory_space<vmem>>, %arg2: memref<32x128xbf16, #tpu.memory_space<vmem>>, %arg3: memref<1x128xf32, #tpu.memory_space<vmem>>, %arg4: memref<128x128xbf16, #tpu.memory_space<vmem>>, %arg5: memref<1x128xf32, #tpu.memory_space<vmem>>, %arg6: memref<128x8xbf16, #tpu.memory_space<vmem>>, %arg7: memref<1x8xf32, #tpu.memory_space<vmem>>, %arg8: memref<64x8xf32, #tpu.memory_space<vmem>>) attributes {dimension_semantics = [#tpu.dimension_semantics<parallel>], iteration_bounds = array<i64: 1>, scalar_prefetch = 0 : i64, scratch_operands = 0 : i64, tpu.core_type = #tpu.core_type<tc>, window_params = [{transform_indices = @transform_0, window_bounds = array<i64: 64, 32>}, {pipeline_mode = #tpu.pipeline_mode<synchronous>, transform_indices = @transform_1, window_bounds = array<i64: 32, 128>}, {pipeline_mode = #tpu.pipeline_mode<synchronous>, transform_indices = @transform_2, window_bounds = array<i64: 1, 128>}, {pipeline_mode = #tpu.pipeline_mode<synchronous>, transform_indices = @transform_3, window_bounds = array<i64: 128, 128>}, {pipeline_mode = #tpu.pipeline_mode<synchronous>, transform_indices = @transform_4, window_bounds = array<i64: 1, 128>}, {pipeline_mode = #tpu.pipeline_mode<synchronous>, transform_indices = @transform_5, window_bounds = array<i64: 128, 8>}, {pipeline_mode = #tpu.pipeline_mode<synchronous>, transform_indices = @transform_6, window_bounds = array<i64: 1, 8>}, {transform_indices = @transform_7, window_bounds = array<i64: 64, 8>}]} {
    %c0 = arith.constant 0 : index
    %c0_0 = arith.constant 0 : index
    %0 = vector.load %arg1[%c0, %c0_0] : memref<64x32xf32, #tpu.memory_space<vmem>>, vector<64x32xf32>
    %1 = arith.truncf %0 : vector<64x32xf32> to vector<64x32xbf16>
    %c0_1 = arith.constant 0 : index
    %c0_2 = arith.constant 0 : index
    %2 = vector.load %arg2[%c0_1, %c0_2] : memref<32x128xbf16, #tpu.memory_space<vmem>>, vector<32x128xbf16>
    %cst = arith.constant dense<0.000000e+00> : vector<64x128xf32>
    %3 = tpu.matmul %1, %2, %cst {dimension_numbers = #tpu.dot_dimension_numbers<[1], [0], [0], [1], [0, 0, 1, 1], [], []>} : vector<64x32xbf16>, vector<32x128xbf16>, vector<64x128xf32> -> vector<64x128xf32>
    %c0_3 = arith.constant 0 : index
    %c0_4 = arith.constant 0 : index
    %4 = vector.load %arg3[%c0_3, %c0_4] : memref<1x128xf32, #tpu.memory_space<vmem>>, vector<1x128xf32>
    %5 = vector.broadcast %4 : vector<1x128xf32> to vector<64x128xf32>
    %6 = arith.addf %3, %5 : vector<64x128xf32>
    %cst_5 = arith.constant 0.000000e+00 : f32
    %7 = vector.broadcast %cst_5 : f32 to vector<64x128xf32>
    %8 = arith.maximumf %6, %7 : vector<64x128xf32>
    %9 = arith.truncf %8 : vector<64x128xf32> to vector<64x128xbf16>
    %c0_6 = arith.constant 0 : index
    %c0_7 = arith.constant 0 : index
    %10 = vector.load %arg4[%c0_6, %c0_7] : memref<128x128xbf16, #tpu.memory_space<vmem>>, vector<128x128xbf16>
    %cst_8 = arith.constant dense<0.000000e+00> : vector<64x128xf32>
    %11 = tpu.matmul %9, %10, %cst_8 {dimension_numbers = #tpu.dot_dimension_numbers<[1], [0], [0], [1], [0, 0, 1, 1], [], []>} : vector<64x128xbf16>, vector<128x128xbf16>, vector<64x128xf32> -> vector<64x128xf32>
    %c0_9 = arith.constant 0 : index
    %c0_10 = arith.constant 0 : index
    %12 = vector.load %arg5[%c0_9, %c0_10] : memref<1x128xf32, #tpu.memory_space<vmem>>, vector<1x128xf32>
    %13 = vector.broadcast %12 : vector<1x128xf32> to vector<64x128xf32>
    %14 = arith.addf %11, %13 : vector<64x128xf32>
    %cst_11 = arith.constant 0.000000e+00 : f32
    %15 = vector.broadcast %cst_11 : f32 to vector<64x128xf32>
    %16 = arith.maximumf %14, %15 : vector<64x128xf32>
    %17 = arith.truncf %16 : vector<64x128xf32> to vector<64x128xbf16>
    %c0_12 = arith.constant 0 : index
    %c0_13 = arith.constant 0 : index
    %18 = vector.load %arg6[%c0_12, %c0_13] : memref<128x8xbf16, #tpu.memory_space<vmem>>, vector<128x8xbf16>
    %cst_14 = arith.constant dense<0.000000e+00> : vector<64x8xf32>
    %19 = tpu.matmul %17, %18, %cst_14 {dimension_numbers = #tpu.dot_dimension_numbers<[1], [0], [0], [1], [0, 0, 1, 1], [], []>} : vector<64x128xbf16>, vector<128x8xbf16>, vector<64x8xf32> -> vector<64x8xf32>
    %c0_15 = arith.constant 0 : index
    %c0_16 = arith.constant 0 : index
    %20 = vector.load %arg7[%c0_15, %c0_16] : memref<1x8xf32, #tpu.memory_space<vmem>>, vector<1x8xf32>
    %21 = vector.broadcast %20 : vector<1x8xf32> to vector<64x8xf32>
    %22 = arith.addf %19, %21 : vector<64x8xf32>
    %c0_17 = arith.constant 0 : index
    %c0_18 = arith.constant 0 : index
    %23 = vector.load %arg8[%c0_17, %c0_18] : memref<64x8xf32, #tpu.memory_space<vmem>>, vector<64x8xf32>
    tpu.vector_store %arg8[%c0_17, %c0_18], %22 {strides = array<i32>} : memref<64x8xf32, #tpu.memory_space<vmem>>, vector<64x8xf32>,
    return
  }
  func.func @transform_0(%arg0: i32) -> (i32, i32) {
    %c0_i32 = arith.constant 0 : i32
    %c0_i32_0 = arith.constant 0 : i32
    return %arg0, %c0_i32 : i32, i32
  }
  func.func @transform_1(%arg0: i32) -> (i32, i32) {
    %c0_i32 = arith.constant 0 : i32
    %c0_i32_0 = arith.constant 0 : i32
    %c0_i32_1 = arith.constant 0 : i32
    return %c0_i32, %c0_i32_0 : i32, i32
  }
  func.func @transform_2(%arg0: i32) -> (i32, i32) {
    %c0_i32 = arith.constant 0 : i32
    %c0_i32_0 = arith.constant 0 : i32
    %c0_i32_1 = arith.constant 0 : i32
    return %c0_i32, %c0_i32_0 : i32, i32
  }
  func.func @transform_3(%arg0: i32) -> (i32, i32) {
    %c0_i32 = arith.constant 0 : i32
    %c0_i32_0 = arith.constant 0 : i32
    %c0_i32_1 = arith.constant 0 : i32
    return %c0_i32, %c0_i32_0 : i32, i32
  }
  func.func @transform_4(%arg0: i32) -> (i32, i32) {
    %c0_i32 = arith.constant 0 : i32
    %c0_i32_0 = arith.constant 0 : i32
    %c0_i32_1 = arith.constant 0 : i32
    return %c0_i32, %c0_i32_0 : i32, i32
  }
  func.func @transform_5(%arg0: i32) -> (i32, i32) {
    %c0_i32 = arith.constant 0 : i32
    %c0_i32_0 = arith.constant 0 : i32
    %c0_i32_1 = arith.constant 0 : i32
    return %c0_i32, %c0_i32_0 : i32, i32
  }
  func.func @transform_6(%arg0: i32) -> (i32, i32) {
    %c0_i32 = arith.constant 0 : i32
    %c0_i32_0 = arith.constant 0 : i32
    %c0_i32_1 = arith.constant 0 : i32
    return %c0_i32, %c0_i32_0 : i32, i32
  }
  func.func @transform_7(%arg0: i32) -> (i32, i32) {
    %c0_i32 = arith.constant 0 : i32
    %c0_i32_0 = arith.constant 0 : i32
    return %arg0, %c0_i32 : i32, i32
  }
}

</mosaic_0001>

<llo_original>
// kernel: _forward_impl.1
$region0: #{_forward_impl.1}
  #allocation0 [shape = 'u32[]', space=smem, size = 0x4, offset = 0x4, fixed_abs, tag = 'smem constant byte address 0x4 - core index']
  #allocation1 [shape = 'u32[144,128]{1,0:T(1,128)}', space=vmem, size = 0x12000, scoped, tag = 'internal scratch']
  %s0 = inlined_call_operand.vmem [shape: f32[64,32], index: 0, kind: input, shape index: {}]
  %s1 = inlined_call_operand.vmem [shape: bf16[32,128], index: 1, kind: input, shape index: {}]
  %s2 = inlined_call_operand.vmem [shape: f32[1,128], index: 2, kind: input, shape index: {}]
  %s3 = inlined_call_operand.vmem [shape: bf16[128,128], index: 3, kind: input, shape index: {}]
  %s4 = inlined_call_operand.vmem [shape: f32[1,128], index: 4, kind: input, shape index: {}]
  %s5 = inlined_call_operand.vmem [shape: bf16[128,8], index: 5, kind: input, shape index: {}]
  %s6 = inlined_call_operand.vmem [shape: f32[1,8], index: 6, kind: input, shape index: {}]
  %s7 = inlined_call_operand.vmem [shape: f32[64,8], index: 7, kind: output, shape index: {}]
  %s8 = sld [smem:[#allocation0]]
  $region38: #{_forward_impl.1} parent=0
    _
  %s10 = ssub.s32 1, %s8
  %s11 = scalar_select 0, %s10, %s8
  // Predicated region
  $region2: #{_forward_impl.1} parent=0 // pred_check
    _
  $region3: #{_forward_impl.1} parent=0 // pred_check_branch
    %13 = sbr.rel (0) target = $region5
  $region4: #{_forward_impl.1} parent=0 // pred_region
    _
  $region5: #{_forward_impl.1} parent=0 // pred_fallthru
    _
  // Predicated region
  $region6: #{_forward_impl.1} parent=0 // pred_check
    _
  $region7: #{_forward_impl.1} parent=0 // pred_check_branch
    %15 = sbr.rel (0) target = $region9
  $region8: #{_forward_impl.1} parent=0 // pred_region
    _
  $region9: #{_forward_impl.1} parent=0 // pred_fallthru
    _
  // Predicated region
  $region10: #{_forward_impl.1} parent=0 // pred_check
    _
  $region11: #{_forward_impl.1} parent=0 // pred_check_branch
    %17 = sbr.rel (0) target = $region13
  $region12: #{_forward_impl.1} parent=0 // pred_region
    _
  $region13: #{_forward_impl.1} parent=0 // pred_fallthru
    _
  // Predicated region
  $region14: #{_forward_impl.1} parent=0 // pred_check
    _
  $region15: #{_forward_impl.1} parent=0 // pred_check_branch
    %19 = sbr.rel (0) target = $region17
  $region16: #{_forward_impl.1} parent=0 // pred_region
    _
  $region17: #{_forward_impl.1} parent=0 // pred_fallthru
    _
  // Predicated region
  $region18: #{_forward_impl.1} parent=0 // pred_check
    _
  $region19: #{_forward_impl.1} parent=0 // pred_check_branch
    %21 = sbr.rel (0) target = $region21
  $region20: #{_forward_impl.1} parent=0 // pred_region
    _
  $region21: #{_forward_impl.1} parent=0 // pred_fallthru
    _
  // Predicated region
  $region22: #{_forward_impl.1} parent=0 // pred_check
    _
  $region23: #{_forward_impl.1} parent=0 // pred_check_branch
    %23 = sbr.rel (0) target = $region25
  $region24: #{_forward_impl.1} parent=0 // pred_region
    _
  $region25: #{_forward_impl.1} parent=0 // pred_fallthru
    _
  // Predicated region
  $region26: #{_forward_impl.1} parent=0 // pred_check
    _
  $region27: #{_forward_impl.1} parent=0 // pred_check_branch
    %25 = sbr.rel (0) target = $region29
  $region28: #{_forward_impl.1} parent=0 // pred_region
    _
  $region29: #{_forward_impl.1} parent=0 // pred_fallthru
    _
  %v27 = vld [vmem:[%s0] sm:$0xff]
  %v28 = vld [vmem:[%s0 + $0x8] sm:$0xff]
  %v29 = vld [vmem:[%s0 + $0x10] sm:$0xff]
  %v30 = vld [vmem:[%s0 + $0x18] sm:$0xff]
  %v31 = vld [vmem:[%s0 + $0x20] sm:$0xff]
  %v32 = vld [vmem:[%s0 + $0x28] sm:$0xff]
  %v33 = vld [vmem:[%s0 + $0x30] sm:$0xff]
  %v34 = vld [vmem:[%s0 + $0x38] sm:$0xff]
  %v35 = vpack.c.bf16 %v28, %v27
  %v36 = vpack.c.bf16 %v30, %v29
  %v37 = vpack.c.bf16 %v32, %v31
  %v38 = vpack.c.bf16 %v34, %v33
  %v39 = vld [vmem:[%s1] sm:$0xf]
  %v40 = vld [vmem:[%s1 + $0x4] sm:$0xf]
  %v41 = vld [vmem:[%s1 + $0x8] sm:$0xf]
  %v42 = vld [vmem:[%s1 + $0xc] sm:$0xf]
  %v43 = vld [vmem:[%s2] sm:$0x1]
  %v45 = vlaneseq
  %v46 = vshrl.u32 %v45, 7
  %v47 = vsub.s32 0, %v46
  %v48 = vrot.slane %v43, %v47
  %v54 = vunpack.c.l.b16 %v39
  %v55 = vunpack.c.l.b16 %v40
  %v56 = vunpack.c.l.b16 %v41
  %v57 = vunpack.c.l.b16 %v42
  %v58 = vpack.c.b16 %v55, %v54
  %v59 = vpack.c.b16 %v57, %v56
  %vm62 = vcmask 261120
  %v64 = vsel %vm62, %v35, 0
  %v67 = vsel %vm62, %v36, 0
  %v70 = vsel %vm62, %v37, 0
  %v73 = vsel %vm62, %v38, 0
  %75 = vmatprep.subr.bf16.mxu0 0
  %76 = vmatpush1.bf16.msra.mxu0 %v58
  %77 = vmatprep.subr.bf16.mxu0 0
  %78 = vmatpush1.bf16.msra.mxu0 %v59
  %79 = vmatprep.subr.bf16.mxu0 0
  %80 = vmatpush1.bf16.msra.mxu0 0
  %81 = vmatprep.subr.bf16.mxu0 0
  %82 = vmatpush1.bf16.msra.mxu0 0
  %83 = vmatprep.subr.bf16.mxu0 0
  %84 = vmatpush1.bf16.msra.mxu0 0
  %85 = vmatprep.subr.bf16.mxu0 0
  %86 = vmatpush1.bf16.msra.mxu0 0
  %87 = vmatprep.subr.bf16.mxu0 0
  %88 = vmatpush1.bf16.msra.mxu0 0
  %89 = vmatprep.subr.bf16.mxu0 0
  %90 = vmatpush1.bf16.msra.mxu0 0
  %91 = vmatprep.subr.bf16.mxu0 0
  %92 = vmatpush1.bf16.msra.mxu0 0
  %93 = vmatprep.subr.bf16.mxu0 0
  %94 = vmatpush1.bf16.msra.mxu0 0
  %95 = vmatprep.subr.bf16.mxu0 0
  %96 = vmatpush1.bf16.msra.mxu0 0
  %97 = vmatprep.subr.bf16.mxu0 0
  %98 = vmatpush1.bf16.msra.mxu0 0
  %99 = vmatprep.subr.bf16.mxu0 0
  %100 = vmatpush1.bf16.msra.mxu0 0
  %101 = vmatprep.subr.bf16.mxu0 0
  %102 = vmatpush1.bf16.msra.mxu0 0
  %103 = vmatprep.subr.bf16.mxu0 0
  %104 = vmatpush1.bf16.msra.mxu0 0
  %105 = vmatprep.subr.bf16.mxu0 0
  %106 = vmatpush1.bf16.msra.mxu0 0
  %107 = vmatprep.mubr.bf16.mxu0 0
  %108 = vmatmul.mubr.bf16.gmra.mrb[0].mxu0 %v64
  %v109 = vpop.f32.mrb[0].mxu0
  %v110 = vadd.f32 %v48, %v109
  %v111 = vpop.f32.mrb[0].mxu0
  %v112 = vpop.f32.mrb[0].mxu0
  %v113 = vadd.f32 %v48, %v112
  %v114 = vpop.f32.mrb[0].mxu0
  %115 = vmatprep.mubr.bf16.mxu0 0
  %116 = vmatmul.mubr.bf16.gmra.mrb[0].mxu0 %v67
  %v117 = vpop.f32.mrb[0].mxu0
  %v118 = vadd.f32 %v48, %v117
  %v119 = vpop.f32.mrb[0].mxu0
  %v120 = vpop.f32.mrb[0].mxu0
  %v121 = vadd.f32 %v48, %v120
  %v122 = vpop.f32.mrb[0].mxu0
  %123 = vmatprep.mubr.bf16.mxu0 0
  %124 = vmatmul.mubr.bf16.gmra.mrb[0].mxu0 %v70
  %v125 = vpop.f32.mrb[0].mxu0
  %v126 = vadd.f32 %v48, %v125
  %v127 = vpop.f32.mrb[0].mxu0
  %v128 = vpop.f32.mrb[0].mxu0
  %v129 = vadd.f32 %v48, %v128
  %v130 = vpop.f32.mrb[0].mxu0
  %131 = vmatprep.mubr.bf16.mxu0 0
  %132 = vmatmul.mubr.bf16.gmra.mrb[0].mxu0 %v73
  %v133 = vpop.f32.mrb[0].mxu0
  %v134 = vadd.f32 %v48, %v133
  %v135 = vpop.f32.mrb[0].mxu0
  %v136 = vpop.f32.mrb[0].mxu0
  %v137 = vadd.f32 %v48, %v136
  %v138 = vpop.f32.mrb[0].mxu0
  %139 = vdwg.mxu0
  %v140 = vmax.f32 %v110, 0.0
  %v141 = vmax.f32 %v113, 0.0
  %v142 = vmax.f32 %v118, 0.0
  %v143 = vmax.f32 %v121, 0.0
  %v144 = vmax.f32 %v126, 0.0
  %v145 = vmax.f32 %v129, 0.0
  %v146 = vmax.f32 %v134, 0.0
  %v147 = vmax.f32 %v137, 0.0
  %v148 = vpack.c.bf16 %v141, %v140
  %v149 = vpack.c.bf16 %v143, %v142
  %v150 = vpack.c.bf16 %v145, %v144
  %v151 = vpack.c.bf16 %v147, %v146
  %v152 = vld [vmem:[%s3] sm:$0xf]
  %v153 = vld [vmem:[%s3 + $0x4] sm:$0xf]
  %v154 = vld [vmem:[%s3 + $0x8] sm:$0xf]
  %v155 = vld [vmem:[%s3 + $0xc] sm:$0xf]
  %v156 = vld [vmem:[%s3 + $0x10] sm:$0xf]
  %v157 = vld [vmem:[%s3 + $0x14] sm:$0xf]
  %v158 = vld [vmem:[%s3 + $0x18] sm:$0xf]
  %v159 = vld [vmem:[%s3 + $0x1c] sm:$0xf]
  %v160 = vld [vmem:[%s3 + $0x20] sm:$0xf]
  %v161 = vld [vmem:[%s3 + $0x24] sm:$0xf]
  %v162 = vld [vmem:[%s3 + $0x28] sm:$0xf]
  %v163 = vld [vmem:[%s3 + $0x2c] sm:$0xf]
  %v164 = vld [vmem:[%s3 + $0x30] sm:$0xf]
  %v165 = vld [vmem:[%s3 + $0x34] sm:$0xf]
  %v166 = vld [vmem:[%s3 + $0x38] sm:$0xf]
  %v167 = vld [vmem:[%s3 + $0x3c] sm:$0xf]
  %v168 = vld [vmem:[%s4] sm:$0x1]
  %v170 = vlaneseq
  %v171 = vshrl.u32 %v170, 7
  %v172 = vsub.s32 0, %v171
  %v173 = vrot.slane %v168, %v172
  %v191 = vunpack.c.l.b16 %v152
  %v192 = vunpack.c.l.b16 %v153
  %v193 = vunpack.c.l.b16 %v154
  %v194 = vunpack.c.l.b16 %v155
  %v195 = vunpack.c.l.b16 %v156
  %v196 = vunpack.c.l.b16 %v157
  %v197 = vunpack.c.l.b16 %v158
  %v198 = vunpack.c.l.b16 %v159
  %v199 = vunpack.c.l.b16 %v160
  %v200 = vunpack.c.l.b16 %v161
  %v201 = vunpack.c.l.b16 %v162
  %v202 = vunpack.c.l.b16 %v163
  %v203 = vunpack.c.l.b16 %v164
  %v204 = vunpack.c.l.b16 %v165
  %v205 = vunpack.c.l.b16 %v166
  %v206 = vunpack.c.l.b16 %v167
  %v207 = vpack.c.b16 %v192, %v191
  %v208 = vpack.c.b16 %v194, %v193
  %v209 = vpack.c.b16 %v196, %v195
  %v210 = vpack.c.b16 %v198, %v197
  %v211 = vpack.c.b16 %v200, %v199
  %v212 = vpack.c.b16 %v202, %v201
  %v213 = vpack.c.b16 %v204, %v203
  %v214 = vpack.c.b16 %v206, %v205
  %223 = vmatprep.subr.bf16.mxu0 0
  %224 = vmatpush1.bf16.msra.mxu0 %v207
  %225 = vmatprep.subr.bf16.mxu0 0
  %226 = vmatpush1.bf16.msra.mxu0 %v208
  %227 = vmatprep.subr.bf16.mxu0 0
  %228 = vmatpush1.bf16.msra.mxu0 %v209
  %229 = vmatprep.subr.bf16.mxu0 0
  %230 = vmatpush1.bf16.msra.mxu0 %v210
  %231 = vmatprep.subr.bf16.mxu0 0
  %232 = vmatpush1.bf16.msra.mxu0 %v211
  %233 = vmatprep.subr.bf16.mxu0 0
  %234 = vmatpush1.bf16.msra.mxu0 %v212
  %235 = vmatprep.subr.bf16.mxu0 0
  %236 = vmatpush1.bf16.msra.mxu0 %v213
  %237 = vmatprep.subr.bf16.mxu0 0
  %238 = vmatpush1.bf16.msra.mxu0 %v214
  %239 = vmatprep.subr.bf16.mxu0 0
  %240 = vmatpush1.bf16.msra.mxu0 0
  %241 = vmatprep.subr.bf16.mxu0 0
  %242 = vmatpush1.bf16.msra.mxu0 0
  %243 = vmatprep.subr.bf16.mxu0 0
  %244 = vmatpush1.bf16.msra.mxu0 0
  %245 = vmatprep.subr.bf16.mxu0 0
  %246 = vmatpush1.bf16.msra.mxu0 0
  %247 = vmatprep.subr.bf16.mxu0 0
  %248 = vmatpush1.bf16.msra.mxu0 0
  %249 = vmatprep.subr.bf16.mxu0 0
  %250 = vmatpush1.bf16.msra.mxu0 0
  %251 = vmatprep.subr.bf16.mxu0 0
  %252 = vmatpush1.bf16.msra.mxu0 0
  %253 = vmatprep.subr.bf16.mxu0 0
  %254 = vmatpush1.bf16.msra.mxu0 0
  %255 = vmatprep.mubr.bf16.mxu0 0
  %256 = vmatmul.mubr.bf16.gmra.mrb[0].mxu0 %v148
  %v257 = vpop.f32.mrb[0].mxu0
  %v258 = vadd.f32 %v173, %v257
  %v259 = vpop.f32.mrb[0].mxu0
  %v260 = vpop.f32.mrb[0].mxu0
  %v261 = vadd.f32 %v173, %v260
  %v262 = vpop.f32.mrb[0].mxu0
  %263 = vmatprep.mubr.bf16.mxu0 0
  %264 = vmatmul.mubr.bf16.gmra.mrb[0].mxu0 %v149
  %v265 = vpop.f32.mrb[0].mxu0
  %v266 = vadd.f32 %v173, %v265
  %v267 = vpop.f32.mrb[0].mxu0
  %v268 = vpop.f32.mrb[0].mxu0
  %v269 = vadd.f32 %v173, %v268
  %v270 = vpop.f32.mrb[0].mxu0
  %271 = vmatprep.mubr.bf16.mxu0 0
  %272 = vmatmul.mubr.bf16.gmra.mrb[0].mxu0 %v150
  %v273 = vpop.f32.mrb[0].mxu0
  %v274 = vadd.f32 %v173, %v273
  %v275 = vpop.f32.mrb[0].mxu0
  %v276 = vpop.f32.mrb[0].mxu0
  %v277 = vadd.f32 %v173, %v276
  %v278 = vpop.f32.mrb[0].mxu0
  %279 = vmatprep.mubr.bf16.mxu0 0
  %280 = vmatmul.mubr.bf16.gmra.mrb[0].mxu0 %v151
  %v281 = vpop.f32.mrb[0].mxu0
  %v282 = vadd.f32 %v173, %v281
  %v283 = vpop.f32.mrb[0].mxu0
  %v284 = vpop.f32.mrb[0].mxu0
  %v285 = vadd.f32 %v173, %v284
  %v286 = vpop.f32.mrb[0].mxu0
  %287 = vdwg.mxu0
  %v288 = vmax.f32 %v258, 0.0
  %v289 = vmax.f32 %v261, 0.0
  %v290 = vmax.f32 %v266, 0.0
  %v291 = vmax.f32 %v269, 0.0
  %v292 = vmax.f32 %v274, 0.0
  %v293 = vmax.f32 %v277, 0.0
  %v294 = vmax.f32 %v282, 0.0
  %v295 = vmax.f32 %v285, 0.0
  %v296 = vpack.c.bf16 %v289, %v288
  %v297 = vpack.c.bf16 %v291, %v290
  %v298 = vpack.c.bf16 %v293, %v292
  %v299 = vpack.c.bf16 %v295, %v294
  %v300 = vld [vmem:[%s5] sm:$0xf]
  %v301 = vld [vmem:[%s5 + $0x4] sm:$0xf]
  %v302 = vld [vmem:[%s5 + $0x8] sm:$0xf]
  %v303 = vld [vmem:[%s5 + $0xc] sm:$0xf]
  %v304 = vld [vmem:[%s5 + $0x10] sm:$0xf]
  %v305 = vld [vmem:[%s5 + $0x14] sm:$0xf]
  %v306 = vld [vmem:[%s5 + $0x18] sm:$0xf]
  %v307 = vld [vmem:[%s5 + $0x1c] sm:$0xf]
  %v308 = vld [vmem:[%s5 + $0x20] sm:$0xf]
  %v309 = vld [vmem:[%s5 + $0x24] sm:$0xf]
  %v310 = vld [vmem:[%s5 + $0x28] sm:$0xf]
  %v311 = vld [vmem:[%s5 + $0x2c] sm:$0xf]
  %v312 = vld [vmem:[%s5 + $0x30] sm:$0xf]
  %v313 = vld [vmem:[%s5 + $0x34] sm:$0xf]
  %v314 = vld [vmem:[%s5 + $0x38] sm:$0xf]
  %v315 = vld [vmem:[%s5 + $0x3c] sm:$0xf]
  %v316 = vld [vmem:[%s6] sm:$0x1]
  %v318 = vlaneseq
  %v319 = vshrl.u32 %v318, 7
  %v320 = vsub.s32 0, %v319
  %v321 = vrot.slane %v316, %v320
  %v339 = vunpack.c.l.b16 %v300
  %v340 = vunpack.c.l.b16 %v301
  %v341 = vunpack.c.l.b16 %v302
  %v342 = vunpack.c.l.b16 %v303
  %v343 = vunpack.c.l.b16 %v304
  %v344 = vunpack.c.l.b16 %v305
  %v345 = vunpack.c.l.b16 %v306
  %v346 = vunpack.c.l.b16 %v307
  %v347 = vunpack.c.l.b16 %v308
  %v348 = vunpack.c.l.b16 %v309
  %v349 = vunpack.c.l.b16 %v310
  %v350 = vunpack.c.l.b16 %v311
  %v351 = vunpack.c.l.b16 %v312
  %v352 = vunpack.c.l.b16 %v313
  %v353 = vunpack.c.l.b16 %v314
  %v354 = vunpack.c.l.b16 %v315
  %v355 = vpack.c.b16 %v340, %v339
  %v356 = vpack.c.b16 %v342, %v341
  %v357 = vpack.c.b16 %v344, %v343
  %v358 = vpack.c.b16 %v346, %v345
  %v359 = vpack.c.b16 %v348, %v347
  %v360 = vpack.c.b16 %v350, %v349
  %v361 = vpack.c.b16 %v352, %v351
  %v362 = vpack.c.b16 %v354, %v353
  %371 = vmatprep.subr.bf16.mxu0 0
  %372 = vmatpush1.bf16.msra.mxu0 %v355
  %373 = vmatprep.subr.bf16.mxu0 0
  %374 = vmatpush1.bf16.msra.mxu0 %v356
  %375 = vmatprep.subr.bf16.mxu0 0
  %376 = vmatpush1.bf16.msra.mxu0 %v357
  %377 = vmatprep.subr.bf16.mxu0 0
  %378 = vmatpush1.bf16.msra.mxu0 %v358
  %379 = vmatprep.subr.bf16.mxu0 0
  %380 = vmatpush1.bf16.msra.mxu0 %v359
  %381 = vmatprep.subr.bf16.mxu0 0
  %382 = vmatpush1.bf16.msra.mxu0 %v360
  %383 = vmatprep.subr.bf16.mxu0 0
  %384 = vmatpush1.bf16.msra.mxu0 %v361
  %385 = vmatprep.subr.bf16.mxu0 0
  %386 = vmatpush1.bf16.msra.mxu0 %v362
  %387 = vmatprep.subr.bf16.mxu0 0
  %388 = vmatpush1.bf16.msra.mxu0 0
  %389 = vmatprep.subr.bf16.mxu0 0
  %390 = vmatpush1.bf16.msra.mxu0 0
  %391 = vmatprep.subr.bf16.mxu0 0
  %392 = vmatpush1.bf16.msra.mxu0 0
  %393 = vmatprep.subr.bf16.mxu0 0
  %394 = vmatpush1.bf16.msra.mxu0 0
  %395 = vmatprep.subr.bf16.mxu0 0
  %396 = vmatpush1.bf16.msra.mxu0 0
  %397 = vmatprep.subr.bf16.mxu0 0
  %398 = vmatpush1.bf16.msra.mxu0 0
  %399 = vmatprep.subr.bf16.mxu0 0
  %400 = vmatpush1.bf16.msra.mxu0 0
  %401 = vmatprep.subr.bf16.mxu0 0
  %402 = vmatpush1.bf16.msra.mxu0 0
  %403 = vmatprep.mubr.bf16.mxu0 0
  %404 = vmatmul.mubr.bf16.gmra.mrb[0].mxu0 %v296
  %v405 = vpop.f32.mrb[0].mxu0
  %v406 = vadd.f32 %v321, %v405
  %v407 = vpop.f32.mrb[0].mxu0
  %v408 = vpop.f32.mrb[0].mxu0
  %v409 = vadd.f32 %v321, %v408
  %v410 = vpop.f32.mrb[0].mxu0
  %411 = vmatprep.mubr.bf16.mxu0 0
  %412 = vmatmul.mubr.bf16.gmra.mrb[0].mxu0 %v297
  %v413 = vpop.f32.mrb[0].mxu0
  %v414 = vadd.f32 %v321, %v413
  %v415 = vpop.f32.mrb[0].mxu0
  %v416 = vpop.f32.mrb[0].mxu0
  %v417 = vadd.f32 %v321, %v416
  %v418 = vpop.f32.mrb[0].mxu0
  %419 = vmatprep.mubr.bf16.mxu0 0
  %420 = vmatmul.mubr.bf16.gmra.mrb[0].mxu0 %v298
  %v421 = vpop.f32.mrb[0].mxu0
  %v422 = vadd.f32 %v321, %v421
  %v423 = vpop.f32.mrb[0].mxu0
  %v424 = vpop.f32.mrb[0].mxu0
  %v425 = vadd.f32 %v321, %v424
  %v426 = vpop.f32.mrb[0].mxu0
  %427 = vmatprep.mubr.bf16.mxu0 0
  %428 = vmatmul.mubr.bf16.gmra.mrb[0].mxu0 %v299
  %v429 = vpop.f32.mrb[0].mxu0
  %v430 = vadd.f32 %v321, %v429
  %v431 = vpop.f32.mrb[0].mxu0
  %v432 = vpop.f32.mrb[0].mxu0
  %v433 = vadd.f32 %v321, %v432
  %v434 = vpop.f32.mrb[0].mxu0
  %435 = vdwg.mxu0
  %vm436 = vcmask 64512
  %437 = vst.msk [vmem:[%s7] sm:$0xff] %vm436, %v406
  %438 = vst.msk [vmem:[%s7 + $0x8] sm:$0xff] %vm436, %v409
  %439 = vst.msk [vmem:[%s7 + $0x10] sm:$0xff] %vm436, %v414
  %440 = vst.msk [vmem:[%s7 + $0x18] sm:$0xff] %vm436, %v417
  %441 = vst.msk [vmem:[%s7 + $0x20] sm:$0xff] %vm436, %v422
  %442 = vst.msk [vmem:[%s7 + $0x28] sm:$0xff] %vm436, %v425
  %443 = vst.msk [vmem:[%s7 + $0x30] sm:$0xff] %vm436, %v430
  %444 = vst.msk [vmem:[%s7 + $0x38] sm:$0xff] %vm436, %v433
  // Predicated region
  $region30: #{_forward_impl.1} parent=0 // pred_check
    _
  $region31: #{_forward_impl.1} parent=0 // pred_check_branch
    %446 = sbr.rel (0) target = $region33
  $region32: #{_forward_impl.1} parent=0 // pred_region
    _
  $region33: #{_forward_impl.1} parent=0 // pred_fallthru
    _
  // Predicated region
  $region34: #{_forward_impl.1} parent=0 // pred_check
    _
  $region35: #{_forward_impl.1} parent=0 // pred_check_branch
    %448 = sbr.rel (0) target = $region37
  $region36: #{_forward_impl.1} parent=0 // pred_region
    _
  $region37: #{_forward_impl.1} parent=0 // pred_fallthru
    _

</llo_original>
